<compile_context>
chip_gen: v7x
topology: tpu7x:2x2x1
jax: 0.10.0
libtpu: 0.0.40
codegen_flags: <defaults>
</compile_context>

<pallas_src>
import functools

import jax
import jax.numpy as jnp
from jax import lax
from jax.experimental import pallas as pl
from jax.experimental.pallas import tpu as pltpu


# ---------------------------------------------------------------------------
# Pallas kernel: fused (W_bn @ patches^T) + bias, then ReLU.
# Output is (Cout_pad, tm): tm (multiple of 128) sits on the lane axis.
# ---------------------------------------------------------------------------
def _matmul_bn_relu_kernel(w_ref, x_ref, bias_ref, o_ref):
    # w_ref:    (Cout_pad, K_pad)  bf16, BN scale already folded in
    # x_ref:    (K_pad, tm)        bf16, im2col patches (transposed, zero pad)
    # bias_ref: (Cout_pad, 1)      f32 folded BN bias
    # o_ref:    (Cout_pad, tm)     f32 output tile (lane-dense)
    acc = jnp.dot(w_ref[...], x_ref[...], preferred_element_type=jnp.float32)
    acc = acc + bias_ref[...]
    o_ref[...] = jnp.maximum(acc, 0.0).astype(o_ref.dtype)  # ReLU


def _pick_tm(M, k_pad, cout_pad, vmem_budget=24 * 1024 * 1024):
    """Largest lane-aligned M tile that keeps >=2 grid steps and fits VMEM."""
    m128 = ((M + 127) // 128) * 128
    if m128 <= 128:
        return 128
    for cand in (2048, 1024, 512, 256, 128):
        if m128 // cand < 2:
            continue  # keep >=2 grid steps so both v7x TensorCores get work
        # Double-buffered streaming blocks + resident weight/bias.
        vmem = (2 * k_pad * cand * 2              # patches blocks, 2 buffers
                + 2 * cout_pad * cand * 4         # output blocks, 2 buffers
                + 2 * cout_pad * k_pad * 2        # weight (resident block)
                + 2 * cout_pad * 4)               # bias
        if vmem <= vmem_budget:
            return cand
    return 128


def _fused_conv_bn_relu_matmul(w2d_T, patches_T, bias2d, out_dtype, tm):
    Cout_pad, K_pad = w2d_T.shape
    _, M_pad = patches_T.shape
    grid = (M_pad // tm,)

    flops = 2 * M_pad * K_pad * Cout_pad
    bytes_accessed = (patches_T.size * 2          # bf16 patches
                      + w2d_T.size * 2            # bf16 weight
                      + Cout_pad * M_pad * 4      # f32 output
                      + Cout_pad * 4)             # bias

    return pl.pallas_call(
        _matmul_bn_relu_kernel,
        out_shape=jax.ShapeDtypeStruct((Cout_pad, M_pad), out_dtype),
        grid_spec=pltpu.PrefetchScalarGridSpec(
            num_scalar_prefetch=0,
            grid=grid,
            in_specs=[
                pl.BlockSpec((Cout_pad, K_pad), lambda i: (0, 0)),  # weight (resident)
                pl.BlockSpec((K_pad, tm), lambda i: (0, i)),        # patches tile
                pl.BlockSpec((Cout_pad, 1), lambda i: (0, 0)),      # folded BN bias
            ],
            out_specs=pl.BlockSpec((Cout_pad, tm), lambda i: (0, i)),
        ),
        compiler_params=pltpu.CompilerParams(
            dimension_semantics=("parallel",),
            vmem_limit_bytes=64 * 1024 * 1024,
        ),
        cost_estimate=pl.CostEstimate(
            flops=flops, transcendentals=0, bytes_accessed=bytes_accessed),
    )(w2d_T, patches_T, bias2d)


# ---------------------------------------------------------------------------
# DOConv2d weight composition (parameter setup, plain JAX).  groups == 1.
# ---------------------------------------------------------------------------
def compose_doconv_weight(W, D, kh, kw):
    # W: (Cout, Cin//groups, D_mul); D: (Cin, kh*kw, D_mul).
    Cout, _, D_mul = W.shape
    Cin = D.shape[0]
    mn = kh * kw
    reps = D_mul // mn
    d_diag = jnp.tile(jnp.eye(mn, dtype=W.dtype)[None, :, :], (Cin, 1, reps))
    rem = D_mul - reps * mn
    if rem:  # PyTorch DOConv zero-pads the identity when D_mul % (kh*kw) != 0.
        d_diag = jnp.concatenate(
            [d_diag, jnp.zeros((Cin, mn, rem), dtype=W.dtype)], axis=2)
    D_eff = D + d_diag
    W_r = W.reshape(Cout, Cin, D_mul)
    DoW = jnp.einsum("ims,ois->oim", D_eff, W_r)          # (Cout, Cin, kh*kw)
    return DoW.reshape(Cout, Cin, kh, kw)                 # OIHW


# ---------------------------------------------------------------------------
# BasicConv forward: DOConv2d -> BatchNorm2d(eval, folded) -> ReLU.
# ---------------------------------------------------------------------------
def basic_conv_forward(x_nchw, dow_oihw, bn_gamma, bn_beta, bn_mean, bn_var,
                       *, stride=1, padding=1, eps=1e-5):
    B, Cin, H, W = x_nchw.shape
    Cout, _, KH, KW = dow_oihw.shape

    # NCHW -> NHWC, pad spatial dims (glue).
    x = jnp.transpose(x_nchw, (0, 2, 3, 1))
    xp = jnp.pad(x, ((0, 0), (padding, padding), (padding, padding), (0, 0)))
    OH = (H + 2 * padding - KH) // stride + 1
    OW = (W + 2 * padding - KW) // stride + 1
    M = B * OH * OW
    K = KH * KW * Cin

    # im2col built directly in transposed (K, M) layout, rows ordered
    # (kh, kw, cin) with cin fastest.
    cols = []
    for kh in range(KH):
        for kw in range(KW):
            tap = xp[:, kh:kh + (OH - 1) * stride + 1:stride,
                     kw:kw + (OW - 1) * stride + 1:stride, :]   # (B, OH, OW, Cin)
            cols.append(jnp.moveaxis(tap, -1, 0).reshape(Cin, M))
    patches_T = jnp.concatenate(cols, axis=0)                   # (K, M)

    # Composed weight: OIHW -> (Cout, KH*KW*Cin), matching patch row ordering.
    w2d = jnp.transpose(dow_oihw, (0, 2, 3, 1)).reshape(Cout, K)

    # Fold BatchNorm (inference mode): scale folded into the weight, bias kept.
    scale = bn_gamma / jnp.sqrt(bn_var + eps)
    bias = bn_beta - bn_mean * scale
    w2d = w2d * scale[:, None]

    # Pad Cout and K to sublane multiples; pad M to a multiple of the M tile.
    Cout_pad = max(8, ((Cout + 7) // 8) * 8)
    K_pad = ((K + 7) // 8) * 8
    tm = _pick_tm(M, K_pad, Cout_pad)
    M_pad = ((M + tm - 1) // tm) * tm

    patches_T = jnp.pad(patches_T, ((0, K_pad - K), (0, M_pad - M)))
    w2d = jnp.pad(w2d, ((0, Cout_pad - Cout), (0, K_pad - K)))
    bias2d = jnp.pad(bias, (0, Cout_pad - Cout)).reshape(Cout_pad, 1)
    bias2d = bias2d.astype(jnp.float32)

    # bf16 operands for the MXU; f32 accumulation + epilogue inside the kernel.
    patches_T = patches_T.astype(jnp.bfloat16)
    w2d = w2d.astype(jnp.bfloat16)

    out2d = _fused_conv_bn_relu_matmul(w2d, patches_T, bias2d,
                                       jnp.float32, tm)     # (Cout_pad, M_pad)
    out = out2d[:Cout, :M].reshape(Cout, B, OH, OW)
    return jnp.transpose(out, (1, 0, 2, 3)).astype(x_nchw.dtype)  # NCHW


# ---------------------------------------------------------------------------
# Demo / self-check.
# ---------------------------------------------------------------------------
if __name__ == "__main__":
    key = jax.random.PRNGKey(0)
    k_x, k_w, k_d, k_g, k_b, k_m, k_v = jax.random.split(key, 7)

    # BasicConv(in_planes=4, out_planes=8, kernel_size=3, stride=1, padding=1,
    #           groups=1, relu=True, bn=True)
    B, Cin, H, W = 2, 4, 16, 16
    Cout, KH, KW = 8, 3, 3
    D_mul = KH * KW

    x = jax.random.normal(k_x, (B, Cin, H, W), dtype=jnp.float32)

    # DOConv2d params: W kaiming-uniform-ish, D small random (torch init is
    # zeros; perturbed so the over-parameterized path is actually exercised).
    fan_in = Cin * D_mul
    bound = (1.0 / fan_in) ** 0.5
    W_p = jax.random.uniform(k_w, (Cout, Cin, D_mul), minval=-bound, maxval=bound)
    D_p = 0.05 * jax.random.normal(k_d, (Cin, KH * KW, D_mul))

    # BatchNorm2d(8) params (inference-mode running stats).
    gamma = 1.0 + 0.1 * jax.random.normal(k_g, (Cout,))
    beta = 0.1 * jax.random.normal(k_b, (Cout,))
    run_mean = 0.05 * jax.random.normal(k_m, (Cout,))
    run_var = jax.random.uniform(k_v, (Cout,), minval=0.5, maxval=1.5)

    dow = compose_doconv_weight(W_p, D_p, KH, KW)          # (Cout, Cin, 3, 3)

    fwd = jax.jit(functools.partial(basic_conv_forward, stride=1, padding=1))
    out = fwd(x, dow, gamma, beta, run_mean, run_var)
    out = jax.block_until_ready(out)

    # Reference (plain JAX, f32) for a correctness sanity check.
    ref = lax.conv_general_dilated(
        x, dow, window_strides=(1, 1), padding=((1, 1), (1, 1)),
        dimension_numbers=("NCHW", "OIHW", "NCHW"))
    scale_ref = gamma / jnp.sqrt(run_var + 1e-5)
    bias_ref = beta - run_mean * scale_ref
    ref = ref * scale_ref[None, :, None, None] + bias_ref[None, :, None, None]
    ref = jnp.maximum(ref, 0.0)

    assert out.shape == (B, Cout, H, W), out.shape
    # bf16 operands (f32 accumulation) -> looser tolerance than a pure-f32 run.
    err = float(jnp.max(jnp.abs(out - ref)))
    assert jnp.allclose(out, ref, rtol=5e-2, atol=5e-2), err

    print("KERNEL_OK")
</pallas_src>

<mosaic_0001>
module attributes {stable_mosaic.version = 11 : i64} {
  func.func @_matmul_bn_relu_kernel(%arg0: i32, %arg1: memref<8x40xbf16, #tpu.memory_space<vmem>>, %arg2: memref<40x256xbf16, #tpu.memory_space<vmem>>, %arg3: memref<8x1xf32, #tpu.memory_space<vmem>>, %arg4: memref<8x256xf32, #tpu.memory_space<vmem>>) attributes {dimension_semantics = [#tpu.dimension_semantics<parallel>], iteration_bounds = array<i64: 2>, scalar_prefetch = 0 : i64, scratch_operands = 0 : i64, tpu.core_type = #tpu.core_type<tc>, window_params = [{pipeline_mode = #tpu.pipeline_mode<synchronous>, transform_indices = @transform_0, window_bounds = array<i64: 8, 40>}, {transform_indices = @transform_1, window_bounds = array<i64: 40, 256>}, {pipeline_mode = #tpu.pipeline_mode<synchronous>, transform_indices = @transform_2, window_bounds = array<i64: 8, 1>}, {transform_indices = @transform_3, window_bounds = array<i64: 8, 256>}]} {
    %c0 = arith.constant 0 : index
    %c0_0 = arith.constant 0 : index
    %0 = vector.load %arg1[%c0, %c0_0] : memref<8x40xbf16, #tpu.memory_space<vmem>>, vector<8x40xbf16>
    %c0_1 = arith.constant 0 : index
    %c0_2 = arith.constant 0 : index
    %1 = vector.load %arg2[%c0_1, %c0_2] : memref<40x256xbf16, #tpu.memory_space<vmem>>, vector<40x256xbf16>
    %cst = arith.constant dense<0.000000e+00> : vector<8x256xf32>
    %2 = tpu.matmul %0, %1, %cst {dimension_numbers = #tpu.dot_dimension_numbers<[1], [0], [0], [1], [0, 0, 1, 1], [], []>} : vector<8x40xbf16>, vector<40x256xbf16>, vector<8x256xf32> -> vector<8x256xf32>
    %c0_3 = arith.constant 0 : index
    %c0_4 = arith.constant 0 : index
    %3 = vector.load %arg3[%c0_3, %c0_4] : memref<8x1xf32, #tpu.memory_space<vmem>>, vector<8x1xf32>
    %4 = vector.broadcast %3 : vector<8x1xf32> to vector<8x256xf32>
    %5 = arith.addf %2, %4 : vector<8x256xf32>
    %cst_5 = arith.constant 0.000000e+00 : f32
    %6 = vector.broadcast %cst_5 : f32 to vector<8x256xf32>
    %7 = arith.maximumf %5, %6 : vector<8x256xf32>
    %c0_6 = arith.constant 0 : index
    %c0_7 = arith.constant 0 : index
    %8 = vector.load %arg4[%c0_6, %c0_7] : memref<8x256xf32, #tpu.memory_space<vmem>>, vector<8x256xf32>
    tpu.vector_store %arg4[%c0_6, %c0_7], %7 {strides = array<i32>} : memref<8x256xf32, #tpu.memory_space<vmem>>, vector<8x256xf32>,
    return
  }
  func.func @transform_0(%arg0: i32) -> (i32, i32) {
    %c0_i32 = arith.constant 0 : i32
    %c0_i32_0 = arith.constant 0 : i32
    %c0_i32_1 = arith.constant 0 : i32
    return %c0_i32, %c0_i32_0 : i32, i32
  }
  func.func @transform_1(%arg0: i32) -> (i32, i32) {
    %c0_i32 = arith.constant 0 : i32
    %c0_i32_0 = arith.constant 0 : i32
    return %c0_i32, %arg0 : i32, i32
  }
  func.func @transform_2(%arg0: i32) -> (i32, i32) {
    %c0_i32 = arith.constant 0 : i32
    %c0_i32_0 = arith.constant 0 : i32
    %c0_i32_1 = arith.constant 0 : i32
    return %c0_i32, %c0_i32_0 : i32, i32
  }
  func.func @transform_3(%arg0: i32) -> (i32, i32) {
    %c0_i32 = arith.constant 0 : i32
    %c0_i32_0 = arith.constant 0 : i32
    return %c0_i32, %arg0 : i32, i32
  }
}

</mosaic_0001>

<llo_original>
// kernel: basic_conv_forward.1
$region0: #{basic_conv_forward.1}
  #allocation0 [shape = 'u32[]', space=smem, size = 0x4, offset = 0x4, fixed_abs, tag = 'smem constant byte address 0x4 - core index']
  #allocation1 [shape = 'u32[144,128]{1,0:T(1,128)}', space=vmem, size = 0x12000, scoped, tag = 'internal scratch']
  %s0 = inlined_call_operand.hbm [shape: bf16[8,40], index: 0, kind: input, shape index: {}]
  %s1 = inlined_call_operand.hbm [shape: bf16[40,512], index: 1, kind: input, shape index: {}]
  %s2 = inlined_call_operand.hbm [shape: f32[8,1], index: 2, kind: input, shape index: {}]
  %s3 = inlined_call_operand.hbm [shape: f32[8,512], index: 3, kind: output, shape index: {}]
  %s4 = sld [smem:[#allocation0]]
  $region57: #{basic_conv_forward.1} parent=0
    _
  %s6 = ssub.s32 1, %s4
  %s7 = scalar_select 0, %s6, %s4
  $region1: #{basic_conv_forward.1} parent=0
    #allocation2 [shape = 'u8[2048]{0}', space=vmem, size = 0x800, scoped, tag = 'input window, operand 0, single buffered']
    #allocation3 [shape = 's32[2]{0}', space=sflag, size = 0x8, scoped, tag = 'scoped memory for basic_conv_forward.1']
    #allocation4 [shape = 's32[2]{0}', space=sflag, size = 0x8, scoped, tag = 'scoped memory for basic_conv_forward.1']
    #allocation5 [shape = 'u8[40960]{0}', space=vmem, size = 0xa000, scoped, tag = 'input window, operand 1']
    #allocation6 [shape = 's32[2]{0}', space=sflag, size = 0x8, scoped, tag = 'scoped memory for basic_conv_forward.1']
    #allocation7 [shape = 'u8[4096]{0}', space=vmem, size = 0x1000, scoped, tag = 'input window, operand 2, single buffered']
    #allocation8 [shape = 'u8[16384]{0}', space=vmem, size = 0x4000, scoped, tag = 'output window, operand 0']
    %8 = vsyncpa [#allocation3], 0
    %9 = vsyncpa [#allocation6], 0
    %s10 = scalar_lea.sflag [#allocation6], 1
    %11 = vsyncpa %s10, 0
    %12 = vsyncpa [#allocation4], 0
    %s13 = scalar_lea.sflag [#allocation4], 1
    %14 = vsyncpa %s13, 0
    loop: start=0, step=1, limit=4
    $region2: #{basic_conv_forward.1} parent=1 // loop_pre_header
      _
    $region3: #{basic_conv_forward.1} parent=1 // loop_header
      %s16 = sphi 0, %s20
      %p17 = scmp.ge.s32.totalorder %s16, 4
      %s24 = sphi 0, %s24
      %s26 = sphi 0, %s24
      %s27 = sphi 0, %s26
      %s41 = sphi 0, %s27
      %s47 = sphi 0, %s49
      %s50 = sphi 0, %s47
      %s51 = sphi 0, %s50
      %s67 = sphi 0, %s51
      %s71 = sphi 0, %s71
      %s73 = sphi 0, %s71
      %s74 = sphi 0, %s73
      %s88 = sphi 0, %s74
      %s94 = sphi 0, %s96
      %s97 = sphi 0, %s94
      %s98 = sphi 0, %s97
      %s114 = sphi 0, %s98
    $region4: #{basic_conv_forward.1} parent=1 // loop_header_branch
      %19 = sbr.rel (%p17) target = $region8
    $region5: #{basic_conv_forward.1} parent=1 // loop_body
      %s21 = ssub.s32 %s16, 1
      %s22 = ssub.s32 %s16, 2
      %s23 = sadd.s32 %s16, 1
      %s25 = sadd.s32 %s24, 1
      %p28 = scmp.eq.s32.totalorder %s16, 1
      %p29 = scmp.ne.s32.totalorder %s24, %s26
      %p30 = scmp.eq.s32.totalorder %s16, 0
      %p31 = por %p29, %p30
      %p32 = scmp.ne.s32.totalorder %s24, %s26
      %p33 = scmp.eq.s32.totalorder %s21, 1
      %p34 = por %p32, %p33
      %p35 = scmp.ne.s32.totalorder %s26, %s27
      %p36 = scmp.eq.s32.totalorder %s21, 0
      %p37 = por %p35, %p36
      %p38 = scmp.ne.s32.totalorder %s26, %s27
      %p39 = scmp.eq.s32.totalorder %s22, 1
      %p40 = por %p38, %p39
      %p42 = scmp.ne.s32.totalorder %s27, %s41
      %p43 = scmp.eq.s32.totalorder %s22, 0
      %p44 = por %p42, %p43
      %s45 = ssub.s32 %s16, %s23
      %p46 = scmp.eq.s32.totalorder %s45, 0
      %s48 = sadd.s32 %s47, 1
      %s49 = scalar_select %p46, %s47, %s48
      %p52 = pneg %p46
      %p53 = scmp.eq.s32.totalorder %s16, 1
      %p54 = por %p52, %p53
      %p55 = scmp.ne.s32.totalorder %s47, %s50
      %p56 = scmp.eq.s32.totalorder %s16, 0
      %p57 = por %p55, %p56
      %p58 = scmp.ne.s32.totalorder %s47, %s50
      %p59 = scmp.eq.s32.totalorder %s21, 1
      %p60 = por %p58, %p59
      %p61 = scmp.ne.s32.totalorder %s50, %s51
      %p62 = scmp.eq.s32.totalorder %s21, 0
      %p63 = por %p61, %p62
      %p64 = scmp.ne.s32.totalorder %s50, %s51
      %p65 = scmp.eq.s32.totalorder %s22, 1
      %p66 = por %p64, %p65
      %p68 = scmp.ne.s32.totalorder %s51, %s67
      %p69 = scmp.eq.s32.totalorder %s22, 0
      %p70 = por %p68, %p69
      %s72 = sadd.s32 %s71, 1
      %p75 = scmp.eq.s32.totalorder %s16, 1
      %p76 = scmp.ne.s32.totalorder %s71, %s73
      %p77 = scmp.eq.s32.totalorder %s16, 0
      %p78 = por %p76, %p77
      %p79 = scmp.ne.s32.totalorder %s71, %s73
      %p80 = scmp.eq.s32.totalorder %s21, 1
      %p81 = por %p79, %p80
      %p82 = scmp.ne.s32.totalorder %s73, %s74
      %p83 = scmp.eq.s32.totalorder %s21, 0
      %p84 = por %p82, %p83
      %p85 = scmp.ne.s32.totalorder %s73, %s74
      %p86 = scmp.eq.s32.totalorder %s22, 1
      %p87 = por %p85, %p86
      %p89 = scmp.ne.s32.totalorder %s74, %s88
      %p90 = scmp.eq.s32.totalorder %s22, 0
      %p91 = por %p89, %p90
      %s92 = ssub.s32 %s16, %s23
      %p93 = scmp.eq.s32.totalorder %s92, 0
      %s95 = sadd.s32 %s94, 1
      %s96 = scalar_select %p93, %s94, %s95
      %p99 = pneg %p93
      %p100 = scmp.eq.s32.totalorder %s16, 1
      %p101 = por %p99, %p100
      %p102 = scmp.ne.s32.totalorder %s94, %s97
      %p103 = scmp.eq.s32.totalorder %s16, 0
      %p104 = por %p102, %p103
      %p105 = scmp.ne.s32.totalorder %s94, %s97
      %p106 = scmp.eq.s32.totalorder %s21, 1
      %p107 = por %p105, %p106
      %p108 = scmp.ne.s32.totalorder %s97, %s98
      %p109 = scmp.eq.s32.totalorder %s21, 0
      %p110 = por %p108, %p109
      %p111 = scmp.ne.s32.totalorder %s97, %s98
      %p112 = scmp.eq.s32.totalorder %s22, 1
      %p113 = por %p111, %p112
      %p115 = scmp.ne.s32.totalorder %s98, %s114
      %p116 = scmp.eq.s32.totalorder %s22, 0
      %p117 = por %p115, %p116
      %p118 = scmp.le.s32.totalorder 1, %s16
      %p119 = scmp.lt.s32.totalorder %s16, 3
      %p120 = pnand %p118, %p119
      %p121 = pneg %p120
      // Predicated region
      $region9: #{basic_conv_forward.1} parent=5 // pred_check
        _
      $region10: #{basic_conv_forward.1} parent=5 // pred_check_branch
        %123 = sbr.rel (%p120) target = $region12
      $region11: #{basic_conv_forward.1} parent=5 // pred_region
        %s124 = ssub.s32 %s16, 1
        // Predicated region
        $region13: #{basic_conv_forward.1} parent=11 // pred_check
          %p125 = pneg %p37
        $region14: #{basic_conv_forward.1} parent=11 // pred_check_branch
          %127 = sbr.rel (%p125) target = $region16
        $region15: #{basic_conv_forward.1} parent=11 // pred_region
          %s129 = ssub.s32 64, 64
          %130 = vsyncadd [#allocation3], %s129
          %s132 = sshll.u32 [#allocation2], 4
          %s133 = int_to_ptr.vmem [resolvable:$true] %s132
          %135 = dma.hbm_to_vmem [thread:$0]  %s0, 64, %s133, [#allocation3]
        $region16: #{basic_conv_forward.1} parent=11 // pred_fallthru
          _
        // Predicated region
        $region17: #{basic_conv_forward.1} parent=11 // pred_check
          %p136 = pneg %p84
        $region18: #{basic_conv_forward.1} parent=11 // pred_check_branch
          %138 = sbr.rel (%p136) target = $region20
        $region19: #{basic_conv_forward.1} parent=11 // pred_region
          %s140 = ssub.s32 128, 128
          %141 = vsyncadd [#allocation6], %s140
          %s143 = sshll.u32 [#allocation7], 4
          %s144 = int_to_ptr.vmem [resolvable:$true] %s143
          %146 = dma.hbm_to_vmem [thread:$0]  %s2, 128, %s144, [#allocation6]
        $region20: #{basic_conv_forward.1} parent=11 // pred_fallthru
          _
      $region12: #{basic_conv_forward.1} parent=5 // pred_fallthru
        _
      %p147 = scmp.lt.s32.totalorder %s16, 2
      // Predicated region
      $region21: #{basic_conv_forward.1} parent=5 // pred_check
        %p148 = pneg %p147
      $region22: #{basic_conv_forward.1} parent=5 // pred_check_branch
        %150 = sbr.rel (%p148) target = $region24
      $region23: #{basic_conv_forward.1} parent=5 // pred_region
        // Predicated region
        $region25: #{basic_conv_forward.1} parent=23 // pred_check
          %p151 = pneg %p57
        $region26: #{basic_conv_forward.1} parent=23 // pred_check_branch
          %153 = sbr.rel (%p151) target = $region28
        $region27: #{basic_conv_forward.1} parent=23 // pred_region
          %s154 = sand.u32 %s16, 1
          %s155 = scalar_lea.sflag [#allocation6], %s154
          %s156 = sand.u32 %s47, 1
          %s157 = smul.addr %s156, 40
          %s158 = scalar_lea.vmem [#allocation5], %s157
          %s159 = smul.u32 2, %s16
          %s161 = ssub.s32 640, 640
          %162 = vsyncadd %s155, %s161
          %s163 = smul.addr %s159, 64
          %s164 = scalar_lea.hbm %s1, %s163
          %s165 = sshll.u32 %s158, 4
          %s166 = int_to_ptr.vmem [resolvable:$true] %s165
          %171 = dma.hbm_to_vmem [thread:$0]  %s164, 640, %s166, %s155, 256, 128, 8
        $region28: #{basic_conv_forward.1} parent=23 // pred_fallthru
          _
      $region24: #{basic_conv_forward.1} parent=5 // pred_fallthru
        _
      %p172 = scmp.le.s32.totalorder 1, %s16
      %p173 = scmp.lt.s32.totalorder %s16, 3
      %p174 = pnand %p172, %p173
      %p175 = pneg %p174
      // Predicated region
      $region29: #{basic_conv_forward.1} parent=5 // pred_check
        _
      $region30: #{basic_conv_forward.1} parent=5 // pred_check_branch
        %177 = sbr.rel (%p174) target = $region32
      $region31: #{basic_conv_forward.1} parent=5 // pred_region
        %s178 = ssub.s32 %s16, 1
        // Predicated region
        $region33: #{basic_conv_forward.1} parent=31 // pred_check
          %p179 = pneg %p37
        $region34: #{basic_conv_forward.1} parent=31 // pred_check_branch
          %181 = sbr.rel (%p179) target = $region36
        $region35: #{basic_conv_forward.1} parent=31 // pred_region
          %182 = dma.done [#allocation3], 64
        $region36: #{basic_conv_forward.1} parent=31 // pred_fallthru
          _
        %s183 = sand.u32 %s21, 1
        %s184 = scalar_lea.sflag [#allocation6], %s183
        %s185 = sand.u32 %s50, 1
        %s186 = smul.addr %s185, 40
        %s187 = scalar_lea.vmem [#allocation5], %s186
        // Predicated region
        $region37: #{basic_conv_forward.1} parent=31 // pred_check
          %p188 = pneg %p63
        $region38: #{basic_conv_forward.1} parent=31 // pred_check_branch
          %190 = sbr.rel (%p188) target = $region40
        $region39: #{basic_conv_forward.1} parent=31 // pred_region
          %191 = dma.done %s184, 640
        $region40: #{basic_conv_forward.1} parent=31 // pred_fallthru
          _
        // Predicated region
        $region41: #{basic_conv_forward.1} parent=31 // pred_check
          %p192 = pneg %p84
        $region42: #{basic_conv_forward.1} parent=31 // pred_check_branch
          %194 = sbr.rel (%p192) target = $region44
        $region43: #{basic_conv_forward.1} parent=31 // pred_region
          %195 = dma.done [#allocation6], 128
        $region44: #{basic_conv_forward.1} parent=31 // pred_fallthru
          _
        %p196 = pneg %p37
        %p197 = pneg %p34
        %s198 = sand.u32 %s21, 1
        %s199 = scalar_lea.sflag [#allocation6], %s198
        %s200 = sand.u32 %s50, 1
        %s201 = smul.addr %s200, 40
        %s202 = scalar_lea.vmem [#allocation5], %s201
        %p203 = pneg %p63
        %p204 = pneg %p60
        %p205 = pneg %p84
        %p206 = pneg %p81
        %p207 = pneg %p110
        %p208 = pneg %p107
        %s209 = sand.u32 %s97, 1
        %s210 = scalar_lea.sflag [#allocation4], %s209
        %s211 = sand.u32 %s97, 1
        %s212 = smul.addr %s211, 16
        %s213 = scalar_lea.vmem [#allocation8], %s212
        %s214 = smul.u32 2, %s21
        %s215 = smul.u32 2, %s21
        %v217 = vld [vmem:[#allocation2] sm:$0xf]
        %v218 = vld [vmem:[%s187] sm:$0xff]
        %v219 = vld [vmem:[%s187 + $0x8] sm:$0xff]
        %v220 = vld [vmem:[%s187 + $0x10] sm:$0xff]
        %v221 = vld [vmem:[%s187 + $0x18] sm:$0xff]
        %v222 = vld [vmem:[%s187 + $0x20] sm:$0xff]
        %v223 = vld [vmem:[#allocation7] sm:$0xff]
        %225 = vset.pattern.permute.xlu0 0
        %226 = vperm.xlu0 %225, %v223
        %v227 = vpop.permute.xlu0 %226
        %v234 = vunpack.c.l.b16 %v218
        %v235 = vunpack.c.h.b16 %v218
        %v236 = vunpack.c.l.b16 %v219
        %v237 = vunpack.c.h.b16 %v219
        %v238 = vunpack.c.l.b16 %v220
        %v239 = vunpack.c.h.b16 %v220
        %v240 = vunpack.c.l.b16 %v221
        %v241 = vunpack.c.h.b16 %v221
        %v242 = vunpack.c.l.b16 %v222
        %v243 = vunpack.c.h.b16 %v222
        %v244 = vpack.c.b16 %v236, %v234
        %v245 = vpack.c.b16 %v237, %v235
        %v246 = vpack.c.b16 %v240, %v238
        %v247 = vpack.c.b16 %v241, %v239
        %v248 = vpack.c.b16 %v242, %v242
        %v249 = vpack.c.b16 %v243, %v243
        %vm254 = vcmask 326656
        %v256 = vsel %vm254, %v217, 0
        %vm258 = vcmask 1043456
        %v260 = vsel %vm258, %v248, 0
        %v263 = vsel %vm258, %v249, 0
        %265 = vmatprep.subr.bf16.mxu0 %v245
        %266 = vmatpush1.bf16.msra.mxu0 %v244
        %267 = vmatprep.subr.bf16.mxu0 %v247
        %268 = vmatpush1.bf16.msra.mxu0 %v246
        %269 = vmatprep.subr.bf16.mxu0 %v263
        %270 = vmatpush1.bf16.msra.mxu0 %v260
        %271 = vmatprep.subr.bf16.mxu0 0
        %272 = vmatpush1.bf16.msra.mxu0 0
        %273 = vmatprep.subr.bf16.mxu0 0
        %274 = vmatpush1.bf16.msra.mxu0 0
        %275 = vmatprep.subr.bf16.mxu0 0
        %276 = vmatpush1.bf16.msra.mxu0 0
        %277 = vmatprep.subr.bf16.mxu0 0
        %278 = vmatpush1.bf16.msra.mxu0 0
        %279 = vmatprep.subr.bf16.mxu0 0
        %280 = vmatpush1.bf16.msra.mxu0 0
        %281 = vmatprep.subr.bf16.mxu0 0
        %282 = vmatpush1.bf16.msra.mxu0 0
        %283 = vmatprep.subr.bf16.mxu0 0
        %284 = vmatpush1.bf16.msra.mxu0 0
        %285 = vmatprep.subr.bf16.mxu0 0
        %286 = vmatpush1.bf16.msra.mxu0 0
        %287 = vmatprep.subr.bf16.mxu0 0
        %288 = vmatpush1.bf16.msra.mxu0 0
        %289 = vmatprep.subr.bf16.mxu0 0
        %290 = vmatpush1.bf16.msra.mxu0 0
        %291 = vmatprep.subr.bf16.mxu0 0
        %292 = vmatpush1.bf16.msra.mxu0 0
        %293 = vmatprep.subr.bf16.mxu0 0
        %294 = vmatpush1.bf16.msra.mxu0 0
        %295 = vmatprep.subr.bf16.mxu0 0
        %296 = vmatpush1.bf16.msra.mxu0 0
        %297 = vmatprep.mubr.bf16.mxu0 0
        %298 = vmatmul.mubr.bf16.gmra.mrb[0].mxu0 %v256
        %v299 = vpop.f32.mrb[0].mxu0
        %v300 = vadd.f32 %v227, %v299
        %v301 = vpop.f32.mrb[0].mxu0
        %v302 = vadd.f32 %v227, %v301
        %v303 = vpop.f32.mrb[0].mxu0
        %v304 = vpop.f32.mrb[0].mxu0
        %305 = vdwg.mxu0
        %v306 = vmax.f32 %v300, 0.0
        %v307 = vmax.f32 %v302, 0.0
        %308 = vst [vmem:[%s213] sm:$0xff] %v306
        %309 = vst [vmem:[%s213 + $0x8] sm:$0xff] %v307
        %s310 = sand.u32 %s97, 1
        %s311 = scalar_lea.sflag [#allocation4], %s310
        %s312 = sand.u32 %s97, 1
        %s313 = smul.addr %s312, 16
        %s314 = scalar_lea.vmem [#allocation8], %s313
        // Predicated region
        $region45: #{basic_conv_forward.1} parent=31 // pred_check
          %p315 = pneg %p107
        $region46: #{basic_conv_forward.1} parent=31 // pred_check_branch
          %317 = sbr.rel (%p315) target = $region48
        $region47: #{basic_conv_forward.1} parent=31 // pred_region
          %s318 = smul.u32 2, %s21
          %s320 = ssub.s32 256, 256
          %321 = vsyncadd %s311, %s320
          %s322 = smul.addr %s318, 128
          %s323 = scalar_lea.hbm %s3, %s322
          %s325 = sshll.u32 %s314, 4
          %s326 = int_to_ptr.vmem [resolvable:$true] %s325
          %328 = dma.vmem_to_hbm [thread:$0]  %s326, 256, %s323, %s311
        $region48: #{basic_conv_forward.1} parent=31 // pred_fallthru
          _
      $region32: #{basic_conv_forward.1} parent=5 // pred_fallthru
        _
      %p329 = scmp.le.s32.totalorder 2, %s16
      // Predicated region
      $region49: #{basic_conv_forward.1} parent=5 // pred_check
        %p330 = pneg %p329
      $region50: #{basic_conv_forward.1} parent=5 // pred_check_branch
        %332 = sbr.rel (%p330) target = $region52
      $region51: #{basic_conv_forward.1} parent=5 // pred_region
        %s333 = ssub.s32 %s16, 2
        // Predicated region
        $region53: #{basic_conv_forward.1} parent=51 // pred_check
          %p334 = pneg %p113
        $region54: #{basic_conv_forward.1} parent=51 // pred_check_branch
          %336 = sbr.rel (%p334) target = $region56
        $region55: #{basic_conv_forward.1} parent=51 // pred_region
          %s337 = sand.u32 %s98, 1
          %s338 = scalar_lea.sflag [#allocation4], %s337
          %s339 = sand.u32 %s98, 1
          %s340 = smul.addr %s339, 16
          %s341 = scalar_lea.vmem [#allocation8], %s340
          %342 = dma.done %s338, 256
        $region56: #{basic_conv_forward.1} parent=51 // pred_fallthru
          _
      $region52: #{basic_conv_forward.1} parent=5 // pred_fallthru
        _
    $region6: #{basic_conv_forward.1} parent=1 // loop_footer
      %s20 = sadd.s32 1, %s16
    $region7: #{basic_conv_forward.1} parent=1 // loop_footer_branch
      %15 = sbr.rel target = $region3
    $region8: #{basic_conv_forward.1} parent=1 // loop_exit
      _
    %343 = vsyncpa [#allocation3], 1
    %s344 = scalar_lea.sflag [#allocation3], 1
    %345 = vsyncpa %s344, 1
    %346 = vsyncpa [#allocation6], 1
    %s347 = scalar_lea.sflag [#allocation6], 1
    %348 = vsyncpa %s347, 1
    %349 = vsyncpa [#allocation4], 1
    %s350 = scalar_lea.sflag [#allocation4], 1
    %351 = vsyncpa %s350, 1

</llo_original>
